<compile_context>
chip_gen: v6e
topology: v6e:2x2x1
jax: 0.10.0
libtpu: 0.0.40
codegen_flags: <defaults>
</compile_context>

<pallas_src>
import functools

import jax
import jax.numpy as jnp
from jax.experimental import pallas as pl
from jax.experimental.pallas import tpu as pltpu

IMG_FEAT = 1000    # ResNet18 output dim (nn.Linear(1000, num_classes))
NUM_CLASSES = 3    # BERT num_labels = 3
LANE = 128
SUBLANE = 8


def _round_up(x: int, m: int) -> int:
    return pl.cdiv(x, m) * m


def fusion_kernel(img_ref, w_ref, b_ref, txt_ref, out_ref):
    # MXU matmul: (TB, F_pad) bf16 @ (F_pad, C_pad) bf16 -> f32 accumulate.
    img_logits = jnp.dot(img_ref[...], w_ref[...],
                         preferred_element_type=jnp.float32)
    # Elementwise tail stays in f32 (bias broadcast (1, C_pad) + 0.5 average).
    out_ref[...] = (txt_ref[...] + img_logits + b_ref[...]) * 0.5


def multimodal_fusion(txt_logits, img_feats, w, b, *,
                      block_b: int = 1024, use_bf16: bool = True):
    """Decision-level fusion: (txt + (img @ W + b)) / 2.

    txt_logits:(B,C) f32, img_feats:(B,F) f32, w:(F,C) f32, b:(C,) f32
    -> (B,C) f32
    """
    B, C = txt_logits.shape
    F = img_feats.shape[1]
    assert w.shape == (F, C) and b.shape == (C,)

    # Pad to TPU-friendly shapes (zero padding keeps the dot product exact).
    F_pad = _round_up(F, LANE)                 # 1000 -> 1024 (8 x 128)
    C_pad = _round_up(max(C, LANE), LANE)      # 3    -> 128 (lane-dense out)
    if B <= block_b:
        TB = _round_up(B, SUBLANE)
        B_pad = TB
    else:
        TB = block_b
        B_pad = _round_up(B, TB)

    img_p = jnp.pad(img_feats, ((0, B_pad - B), (0, F_pad - F)))
    txt_p = jnp.pad(txt_logits, ((0, B_pad - B), (0, C_pad - C)))
    w_p = jnp.pad(w, ((0, F_pad - F), (0, C_pad - C)))
    b_p = jnp.pad(b, (0, C_pad - C)).reshape(1, C_pad)

    if use_bf16:
        # Streamed image tile + resident weights in bf16; f32 accumulation.
        img_p = img_p.astype(jnp.bfloat16)
        w_p = w_p.astype(jnp.bfloat16)

    grid = (B_pad // TB,)

    cost = pl.CostEstimate(
        flops=2 * B_pad * F_pad * C_pad,
        transcendentals=0,
        bytes_accessed=(img_p.size * img_p.dtype.itemsize
                        + w_p.size * w_p.dtype.itemsize
                        + txt_p.size * 4
                        + b_p.size * 4
                        + B_pad * C_pad * 4),
    )

    out_p = pl.pallas_call(
        fusion_kernel,
        out_shape=jax.ShapeDtypeStruct((B_pad, C_pad), jnp.float32),
        grid=grid,
        in_specs=[
            # Streamed per-batch-tile inputs (auto double-buffered).
            pl.BlockSpec((TB, F_pad), lambda i: (i, 0)),     # img feats
            # VMEM-resident across all grid steps.
            pl.BlockSpec((F_pad, C_pad), lambda i: (0, 0)),  # W
            pl.BlockSpec((1, C_pad), lambda i: (0, 0)),      # bias
            pl.BlockSpec((TB, C_pad), lambda i: (i, 0)),     # txt logits
        ],
        out_specs=pl.BlockSpec((TB, C_pad), lambda i: (i, 0)),
        compiler_params=pltpu.CompilerParams(
            dimension_semantics=("parallel",)),
        cost_estimate=cost,
    )(img_p, w_p, b_p, txt_p)

    return out_p[:B, :C]


if __name__ == "__main__":
    B = 2
    key = jax.random.PRNGKey(0)
    k_txt, k_img, k_w, k_b = jax.random.split(key, 4)

    # Stand-ins for frozen BERT / ResNet18 logits.
    txt_logits = jax.random.normal(k_txt, (B, NUM_CLASSES), dtype=jnp.float32)
    img_feats = jax.random.normal(k_img, (B, IMG_FEAT), dtype=jnp.float32)

    # fc_image parameters, stored as (in, out) so the kernel does x @ W + b.
    w = jax.random.normal(k_w, (IMG_FEAT, NUM_CLASSES), dtype=jnp.float32) * 0.02
    b = jax.random.normal(k_b, (NUM_CLASSES,), dtype=jnp.float32) * 0.02

    out = multimodal_fusion(txt_logits, img_feats, w, b)
    jax.block_until_ready(out)

    # Pure-JAX f32 reference (loose tolerance: streamed inputs are bf16).
    ref = (txt_logits + (img_feats @ w + b)) * 0.5
    assert out.shape == (B, NUM_CLASSES)
    assert jnp.allclose(out, ref, atol=1e-2, rtol=1e-2), "mismatch vs reference"

    print("KERNEL_OK")
</pallas_src>

<mosaic_0001>
module attributes {stable_mosaic.version = 11 : i64} {
  func.func @fusion_kernel(%arg0: i32, %arg1: memref<8x1024xbf16, #tpu.memory_space<vmem>>, %arg2: memref<1024x128xbf16, #tpu.memory_space<vmem>>, %arg3: memref<1x128xf32, #tpu.memory_space<vmem>>, %arg4: memref<8x128xf32, #tpu.memory_space<vmem>>, %arg5: memref<8x128xf32, #tpu.memory_space<vmem>>) attributes {dimension_semantics = [#tpu.dimension_semantics<parallel>], iteration_bounds = array<i64: 1>, scalar_prefetch = 0 : i64, scratch_operands = 0 : i64, tpu.core_type = #tpu.core_type<tc>, window_params = [{transform_indices = @transform_0, window_bounds = array<i64: 8, 1024>}, {pipeline_mode = #tpu.pipeline_mode<synchronous>, transform_indices = @transform_1, window_bounds = array<i64: 1024, 128>}, {pipeline_mode = #tpu.pipeline_mode<synchronous>, transform_indices = @transform_2, window_bounds = array<i64: 1, 128>}, {transform_indices = @transform_3, window_bounds = array<i64: 8, 128>}, {transform_indices = @transform_4, window_bounds = array<i64: 8, 128>}]} {
    %c0 = arith.constant 0 : index
    %c0_0 = arith.constant 0 : index
    %0 = vector.load %arg1[%c0, %c0_0] : memref<8x1024xbf16, #tpu.memory_space<vmem>>, vector<8x1024xbf16>
    %c0_1 = arith.constant 0 : index
    %c0_2 = arith.constant 0 : index
    %1 = vector.load %arg2[%c0_1, %c0_2] : memref<1024x128xbf16, #tpu.memory_space<vmem>>, vector<1024x128xbf16>
    %cst = arith.constant dense<0.000000e+00> : vector<8x128xf32>
    %2 = tpu.matmul %0, %1, %cst {dimension_numbers = #tpu.dot_dimension_numbers<[1], [0], [0], [1], [0, 0, 1, 1], [], []>} : vector<8x1024xbf16>, vector<1024x128xbf16>, vector<8x128xf32> -> vector<8x128xf32>
    %c0_3 = arith.constant 0 : index
    %c0_4 = arith.constant 0 : index
    %3 = vector.load %arg4[%c0_3, %c0_4] : memref<8x128xf32, #tpu.memory_space<vmem>>, vector<8x128xf32>
    %4 = arith.addf %3, %2 : vector<8x128xf32>
    %c0_5 = arith.constant 0 : index
    %c0_6 = arith.constant 0 : index
    %5 = vector.load %arg3[%c0_5, %c0_6] : memref<1x128xf32, #tpu.memory_space<vmem>>, vector<1x128xf32>
    %6 = vector.broadcast %5 : vector<1x128xf32> to vector<8x128xf32>
    %7 = arith.addf %4, %6 : vector<8x128xf32>
    %cst_7 = arith.constant 5.000000e-01 : f32
    %8 = vector.broadcast %cst_7 : f32 to vector<8x128xf32>
    %9 = arith.mulf %7, %8 : vector<8x128xf32>
    %c0_8 = arith.constant 0 : index
    %c0_9 = arith.constant 0 : index
    %10 = vector.load %arg5[%c0_8, %c0_9] : memref<8x128xf32, #tpu.memory_space<vmem>>, vector<8x128xf32>
    tpu.vector_store %arg5[%c0_8, %c0_9], %9 {strides = array<i32>} : memref<8x128xf32, #tpu.memory_space<vmem>>, vector<8x128xf32>,
    return
  }
  func.func @transform_0(%arg0: i32) -> (i32, i32) {
    %c0_i32 = arith.constant 0 : i32
    %c0_i32_0 = arith.constant 0 : i32
    return %arg0, %c0_i32 : i32, i32
  }
  func.func @transform_1(%arg0: i32) -> (i32, i32) {
    %c0_i32 = arith.constant 0 : i32
    %c0_i32_0 = arith.constant 0 : i32
    %c0_i32_1 = arith.constant 0 : i32
    return %c0_i32, %c0_i32_0 : i32, i32
  }
  func.func @transform_2(%arg0: i32) -> (i32, i32) {
    %c0_i32 = arith.constant 0 : i32
    %c0_i32_0 = arith.constant 0 : i32
    %c0_i32_1 = arith.constant 0 : i32
    return %c0_i32, %c0_i32_0 : i32, i32
  }
  func.func @transform_3(%arg0: i32) -> (i32, i32) {
    %c0_i32 = arith.constant 0 : i32
    %c0_i32_0 = arith.constant 0 : i32
    return %arg0, %c0_i32 : i32, i32
  }
  func.func @transform_4(%arg0: i32) -> (i32, i32) {
    %c0_i32 = arith.constant 0 : i32
    %c0_i32_0 = arith.constant 0 : i32
    return %arg0, %c0_i32 : i32, i32
  }
}

</mosaic_0001>

<llo_original>
// kernel: tpu_custom_call.1
$region0: #{tpu_custom_call.1}
  #allocation0 [shape = 'u32[]', space=smem, size = 0x4, offset = 0x4, fixed_abs, tag = 'smem constant byte address 0x4 - core index']
  #allocation1 [shape = 'u32[144,128]{1,0:T(1,128)}', space=vmem, size = 0x12000, scoped, tag = 'internal scratch']
  %s0 = inlined_call_operand.hbm [shape: bf16[8,1024], index: 0, kind: input, shape index: {}]
  %s1 = inlined_call_operand.hbm [shape: bf16[1024,128], index: 1, kind: input, shape index: {}]
  %s2 = inlined_call_operand.vmem [shape: f32[1,128], index: 2, kind: input, shape index: {}]
  %s3 = inlined_call_operand.hbm [shape: f32[8,128], index: 3, kind: input, shape index: {}]
  %s4 = inlined_call_operand.hbm [shape: f32[8,128], index: 4, kind: output, shape index: {}]
  %s5 = sld [smem:[#allocation0]]
  $region38: #{tpu_custom_call.1} parent=0
    _
  %s7 = ssub.s32 1, %s5
  %s8 = scalar_select 0, %s7, %s5
  $region1: #{tpu_custom_call.1} parent=0
    #allocation2 [shape = 'u8[16384]{0}', space=vmem, size = 0x4000, scoped, tag = 'input window, operand 0, single buffered']
    #allocation3 [shape = 's32[1]{0}', space=sflag, size = 0x4, scoped, tag = 'scoped memory for tpu_custom_call.1']
    #allocation4 [shape = 's32[1]{0}', space=sflag, size = 0x4, scoped, tag = 'scoped memory for tpu_custom_call.1']
    #allocation5 [shape = 'u8[262144]{0}', space=vmem, size = 0x40000, scoped, tag = 'input window, operand 1, single buffered']
    #allocation6 [shape = 's32[1]{0}', space=sflag, size = 0x4, scoped, tag = 'scoped memory for tpu_custom_call.1']
    #allocation7 [shape = 'u8[4096]{0}', space=vmem, size = 0x1000, scoped, tag = 'input window, operand 3, single buffered']
    #allocation8 [shape = 'u8[4096]{0}', space=vmem, size = 0x1000, scoped, tag = 'output window, operand 0, single buffered']
    %9 = vsyncpa [#allocation3], 0
    %10 = vsyncpa [#allocation6], 0
    %11 = vsyncpa [#allocation4], 0
    // Predicated region
    $region2: #{tpu_custom_call.1} parent=1 // pred_check
      _
    $region3: #{tpu_custom_call.1} parent=1 // pred_check_branch
      %13 = sbr.rel (0) target = $region5
    $region4: #{tpu_custom_call.1} parent=1 // pred_region
      %s15 = ssub.s32 512, 512
      %16 = vsyncadd [#allocation3], %s15
      %s18 = sshll.u32 [#allocation2], 4
      %s19 = int_to_ptr.vmem [resolvable:$true] %s18
      %21 = dma.hbm_to_vmem [thread:$0]  %s0, 512, %s19, [#allocation3]
    $region5: #{tpu_custom_call.1} parent=1 // pred_fallthru
      _
    // Predicated region
    $region6: #{tpu_custom_call.1} parent=1 // pred_check
      _
    $region7: #{tpu_custom_call.1} parent=1 // pred_check_branch
      %23 = sbr.rel (0) target = $region9
    $region8: #{tpu_custom_call.1} parent=1 // pred_region
      %s25 = ssub.s32 8192, 8192
      %26 = vsyncadd [#allocation6], %s25
      %s27 = sshll.u32 [#allocation5], 4
      %s28 = int_to_ptr.vmem [resolvable:$true] %s27
      %33 = dma.hbm_to_vmem [thread:$0]  %s1, 8192, %s28, [#allocation6], 64, 64, 4
    $region9: #{tpu_custom_call.1} parent=1 // pred_fallthru
      _
    // Predicated region
    $region10: #{tpu_custom_call.1} parent=1 // pred_check
      _
    $region11: #{tpu_custom_call.1} parent=1 // pred_check_branch
      %35 = sbr.rel (0) target = $region13
    $region12: #{tpu_custom_call.1} parent=1 // pred_region
      _
    $region13: #{tpu_custom_call.1} parent=1 // pred_fallthru
      _
    // Predicated region
    $region14: #{tpu_custom_call.1} parent=1 // pred_check
      _
    $region15: #{tpu_custom_call.1} parent=1 // pred_check_branch
      %37 = sbr.rel (0) target = $region17
    $region16: #{tpu_custom_call.1} parent=1 // pred_region
      %s39 = ssub.s32 128, 128
      %40 = vsyncadd [#allocation6], %s39
      %s42 = sshll.u32 [#allocation7], 4
      %s43 = int_to_ptr.vmem [resolvable:$true] %s42
      %45 = dma.hbm_to_vmem [thread:$0]  %s3, 128, %s43, [#allocation6]
    $region17: #{tpu_custom_call.1} parent=1 // pred_fallthru
      _
    // Predicated region
    $region18: #{tpu_custom_call.1} parent=1 // pred_check
      _
    $region19: #{tpu_custom_call.1} parent=1 // pred_check_branch
      %47 = sbr.rel (0) target = $region21
    $region20: #{tpu_custom_call.1} parent=1 // pred_region
      %48 = dma.done [#allocation3], 512
    $region21: #{tpu_custom_call.1} parent=1 // pred_fallthru
      _
    // Predicated region
    $region22: #{tpu_custom_call.1} parent=1 // pred_check
      _
    $region23: #{tpu_custom_call.1} parent=1 // pred_check_branch
      %50 = sbr.rel (0) target = $region25
    $region24: #{tpu_custom_call.1} parent=1 // pred_region
      %51 = dma.done [#allocation6], 8192
    $region25: #{tpu_custom_call.1} parent=1 // pred_fallthru
      _
    // Predicated region
    $region26: #{tpu_custom_call.1} parent=1 // pred_check
      _
    $region27: #{tpu_custom_call.1} parent=1 // pred_check_branch
      %53 = sbr.rel (0) target = $region29
    $region28: #{tpu_custom_call.1} parent=1 // pred_region
      %54 = dma.done [#allocation6], 128
    $region29: #{tpu_custom_call.1} parent=1 // pred_fallthru
      _
    %v56 = vld [vmem:[#allocation2] sm:$0xff]
    %v57 = vld [vmem:[#allocation2 + $0x8] sm:$0xff]
    %v58 = vld [vmem:[#allocation2 + $0x10] sm:$0xff]
    %v59 = vld [vmem:[#allocation2 + $0x18] sm:$0xff]
    %v60 = vld [vmem:[#allocation5] sm:$0xf]
    %v61 = vld [vmem:[#allocation5 + $0x4] sm:$0xf]
    %v62 = vld [vmem:[#allocation5 + $0x8] sm:$0xf]
    %v63 = vld [vmem:[#allocation5 + $0xc] sm:$0xf]
    %v64 = vld [vmem:[#allocation5 + $0x10] sm:$0xf]
    %v65 = vld [vmem:[#allocation5 + $0x14] sm:$0xf]
    %v66 = vld [vmem:[#allocation5 + $0x18] sm:$0xf]
    %v67 = vld [vmem:[#allocation5 + $0x1c] sm:$0xf]
    %v68 = vld [vmem:[#allocation5 + $0x20] sm:$0xf]
    %v69 = vld [vmem:[#allocation5 + $0x24] sm:$0xf]
    %v70 = vld [vmem:[#allocation5 + $0x28] sm:$0xf]
    %v71 = vld [vmem:[#allocation5 + $0x2c] sm:$0xf]
    %v72 = vld [vmem:[#allocation5 + $0x30] sm:$0xf]
    %v73 = vld [vmem:[#allocation5 + $0x34] sm:$0xf]
    %v74 = vld [vmem:[#allocation5 + $0x38] sm:$0xf]
    %v75 = vld [vmem:[#allocation5 + $0x3c] sm:$0xf]
    %v76 = vld [vmem:[#allocation5 + $0x40] sm:$0xf]
    %v77 = vld [vmem:[#allocation5 + $0x44] sm:$0xf]
    %v78 = vld [vmem:[#allocation5 + $0x48] sm:$0xf]
    %v79 = vld [vmem:[#allocation5 + $0x4c] sm:$0xf]
    %v80 = vld [vmem:[#allocation5 + $0x50] sm:$0xf]
    %v81 = vld [vmem:[#allocation5 + $0x54] sm:$0xf]
    %v82 = vld [vmem:[#allocation5 + $0x58] sm:$0xf]
    %v83 = vld [vmem:[#allocation5 + $0x5c] sm:$0xf]
    %v84 = vld [vmem:[#allocation5 + $0x60] sm:$0xf]
    %v85 = vld [vmem:[#allocation5 + $0x64] sm:$0xf]
    %v86 = vld [vmem:[#allocation5 + $0x68] sm:$0xf]
    %v87 = vld [vmem:[#allocation5 + $0x6c] sm:$0xf]
    %v88 = vld [vmem:[#allocation5 + $0x70] sm:$0xf]
    %v89 = vld [vmem:[#allocation5 + $0x74] sm:$0xf]
    %v90 = vld [vmem:[#allocation5 + $0x78] sm:$0xf]
    %v91 = vld [vmem:[#allocation5 + $0x7c] sm:$0xf]
    %v92 = vld [vmem:[#allocation5 + $0x80] sm:$0xf]
    %v93 = vld [vmem:[#allocation5 + $0x84] sm:$0xf]
    %v94 = vld [vmem:[#allocation5 + $0x88] sm:$0xf]
    %v95 = vld [vmem:[#allocation5 + $0x8c] sm:$0xf]
    %v96 = vld [vmem:[#allocation5 + $0x90] sm:$0xf]
    %v97 = vld [vmem:[#allocation5 + $0x94] sm:$0xf]
    %v98 = vld [vmem:[#allocation5 + $0x98] sm:$0xf]
    %v99 = vld [vmem:[#allocation5 + $0x9c] sm:$0xf]
    %v100 = vld [vmem:[#allocation5 + $0xa0] sm:$0xf]
    %v101 = vld [vmem:[#allocation5 + $0xa4] sm:$0xf]
    %v102 = vld [vmem:[#allocation5 + $0xa8] sm:$0xf]
    %v103 = vld [vmem:[#allocation5 + $0xac] sm:$0xf]
    %v104 = vld [vmem:[#allocation5 + $0xb0] sm:$0xf]
    %v105 = vld [vmem:[#allocation5 + $0xb4] sm:$0xf]
    %v106 = vld [vmem:[#allocation5 + $0xb8] sm:$0xf]
    %v107 = vld [vmem:[#allocation5 + $0xbc] sm:$0xf]
    %v108 = vld [vmem:[#allocation5 + $0xc0] sm:$0xf]
    %v109 = vld [vmem:[#allocation5 + $0xc4] sm:$0xf]
    %v110 = vld [vmem:[#allocation5 + $0xc8] sm:$0xf]
    %v111 = vld [vmem:[#allocation5 + $0xcc] sm:$0xf]
    %v112 = vld [vmem:[#allocation5 + $0xd0] sm:$0xf]
    %v113 = vld [vmem:[#allocation5 + $0xd4] sm:$0xf]
    %v114 = vld [vmem:[#allocation5 + $0xd8] sm:$0xf]
    %v115 = vld [vmem:[#allocation5 + $0xdc] sm:$0xf]
    %v116 = vld [vmem:[#allocation5 + $0xe0] sm:$0xf]
    %v117 = vld [vmem:[#allocation5 + $0xe4] sm:$0xf]
    %v118 = vld [vmem:[#allocation5 + $0xe8] sm:$0xf]
    %v119 = vld [vmem:[#allocation5 + $0xec] sm:$0xf]
    %v120 = vld [vmem:[#allocation5 + $0xf0] sm:$0xf]
    %v121 = vld [vmem:[#allocation5 + $0xf4] sm:$0xf]
    %v122 = vld [vmem:[#allocation5 + $0xf8] sm:$0xf]
    %v123 = vld [vmem:[#allocation5 + $0xfc] sm:$0xf]
    %v124 = vld [vmem:[#allocation5 + $0x100] sm:$0xf]
    %v125 = vld [vmem:[#allocation5 + $0x104] sm:$0xf]
    %v126 = vld [vmem:[#allocation5 + $0x108] sm:$0xf]
    %v127 = vld [vmem:[#allocation5 + $0x10c] sm:$0xf]
    %v128 = vld [vmem:[#allocation5 + $0x110] sm:$0xf]
    %v129 = vld [vmem:[#allocation5 + $0x114] sm:$0xf]
    %v130 = vld [vmem:[#allocation5 + $0x118] sm:$0xf]
    %v131 = vld [vmem:[#allocation5 + $0x11c] sm:$0xf]
    %v132 = vld [vmem:[#allocation5 + $0x120] sm:$0xf]
    %v133 = vld [vmem:[#allocation5 + $0x124] sm:$0xf]
    %v134 = vld [vmem:[#allocation5 + $0x128] sm:$0xf]
    %v135 = vld [vmem:[#allocation5 + $0x12c] sm:$0xf]
    %v136 = vld [vmem:[#allocation5 + $0x130] sm:$0xf]
    %v137 = vld [vmem:[#allocation5 + $0x134] sm:$0xf]
    %v138 = vld [vmem:[#allocation5 + $0x138] sm:$0xf]
    %v139 = vld [vmem:[#allocation5 + $0x13c] sm:$0xf]
    %v140 = vld [vmem:[#allocation5 + $0x140] sm:$0xf]
    %v141 = vld [vmem:[#allocation5 + $0x144] sm:$0xf]
    %v142 = vld [vmem:[#allocation5 + $0x148] sm:$0xf]
    %v143 = vld [vmem:[#allocation5 + $0x14c] sm:$0xf]
    %v144 = vld [vmem:[#allocation5 + $0x150] sm:$0xf]
    %v145 = vld [vmem:[#allocation5 + $0x154] sm:$0xf]
    %v146 = vld [vmem:[#allocation5 + $0x158] sm:$0xf]
    %v147 = vld [vmem:[#allocation5 + $0x15c] sm:$0xf]
    %v148 = vld [vmem:[#allocation5 + $0x160] sm:$0xf]
    %v149 = vld [vmem:[#allocation5 + $0x164] sm:$0xf]
    %v150 = vld [vmem:[#allocation5 + $0x168] sm:$0xf]
    %v151 = vld [vmem:[#allocation5 + $0x16c] sm:$0xf]
    %v152 = vld [vmem:[#allocation5 + $0x170] sm:$0xf]
    %v153 = vld [vmem:[#allocation5 + $0x174] sm:$0xf]
    %v154 = vld [vmem:[#allocation5 + $0x178] sm:$0xf]
    %v155 = vld [vmem:[#allocation5 + $0x17c] sm:$0xf]
    %v156 = vld [vmem:[#allocation5 + $0x180] sm:$0xf]
    %v157 = vld [vmem:[#allocation5 + $0x184] sm:$0xf]
    %v158 = vld [vmem:[#allocation5 + $0x188] sm:$0xf]
    %v159 = vld [vmem:[#allocation5 + $0x18c] sm:$0xf]
    %v160 = vld [vmem:[#allocation5 + $0x190] sm:$0xf]
    %v161 = vld [vmem:[#allocation5 + $0x194] sm:$0xf]
    %v162 = vld [vmem:[#allocation5 + $0x198] sm:$0xf]
    %v163 = vld [vmem:[#allocation5 + $0x19c] sm:$0xf]
    %v164 = vld [vmem:[#allocation5 + $0x1a0] sm:$0xf]
    %v165 = vld [vmem:[#allocation5 + $0x1a4] sm:$0xf]
    %v166 = vld [vmem:[#allocation5 + $0x1a8] sm:$0xf]
    %v167 = vld [vmem:[#allocation5 + $0x1ac] sm:$0xf]
    %v168 = vld [vmem:[#allocation5 + $0x1b0] sm:$0xf]
    %v169 = vld [vmem:[#allocation5 + $0x1b4] sm:$0xf]
    %v170 = vld [vmem:[#allocation5 + $0x1b8] sm:$0xf]
    %v171 = vld [vmem:[#allocation5 + $0x1bc] sm:$0xf]
    %v172 = vld [vmem:[#allocation5 + $0x1c0] sm:$0xf]
    %v173 = vld [vmem:[#allocation5 + $0x1c4] sm:$0xf]
    %v174 = vld [vmem:[#allocation5 + $0x1c8] sm:$0xf]
    %v175 = vld [vmem:[#allocation5 + $0x1cc] sm:$0xf]
    %v176 = vld [vmem:[#allocation5 + $0x1d0] sm:$0xf]
    %v177 = vld [vmem:[#allocation5 + $0x1d4] sm:$0xf]
    %v178 = vld [vmem:[#allocation5 + $0x1d8] sm:$0xf]
    %v179 = vld [vmem:[#allocation5 + $0x1dc] sm:$0xf]
    %v180 = vld [vmem:[#allocation5 + $0x1e0] sm:$0xf]
    %v181 = vld [vmem:[#allocation5 + $0x1e4] sm:$0xf]
    %v182 = vld [vmem:[#allocation5 + $0x1e8] sm:$0xf]
    %v183 = vld [vmem:[#allocation5 + $0x1ec] sm:$0xf]
    %v184 = vld [vmem:[#allocation5 + $0x1f0] sm:$0xf]
    %v185 = vld [vmem:[#allocation5 + $0x1f4] sm:$0xf]
    %v186 = vld [vmem:[#allocation5 + $0x1f8] sm:$0xf]
    %v187 = vld [vmem:[#allocation5 + $0x1fc] sm:$0xf]
    %v192 = vunpack.c.l.b16 %v56
    %v193 = vunpack.c.h.b16 %v56
    %v194 = vunpack.c.l.b16 %v57
    %v195 = vunpack.c.h.b16 %v57
    %v196 = vunpack.c.l.b16 %v58
    %v197 = vunpack.c.h.b16 %v58
    %v198 = vunpack.c.l.b16 %v59
    %v199 = vunpack.c.h.b16 %v59
    %v200 = vpack.c.b16 %v192, %v192
    %v201 = vpack.c.b16 %v193, %v193
    %v202 = vpack.c.b16 %v194, %v194
    %v203 = vpack.c.b16 %v195, %v195
    %v204 = vpack.c.b16 %v196, %v196
    %v205 = vpack.c.b16 %v197, %v197
    %v206 = vpack.c.b16 %v198, %v198
    %v207 = vpack.c.b16 %v199, %v199
    %v344 = vunpack.c.l.b16 %v60
    %v345 = vunpack.c.l.b16 %v61
    %v346 = vunpack.c.l.b16 %v62
    %v347 = vunpack.c.l.b16 %v63
    %v348 = vunpack.c.l.b16 %v64
    %v349 = vunpack.c.l.b16 %v65
    %v350 = vunpack.c.l.b16 %v66
    %v351 = vunpack.c.l.b16 %v67
    %v352 = vunpack.c.l.b16 %v68
    %v353 = vunpack.c.l.b16 %v69
    %v354 = vunpack.c.l.b16 %v70
    %v355 = vunpack.c.l.b16 %v71
    %v356 = vunpack.c.l.b16 %v72
    %v357 = vunpack.c.l.b16 %v73
    %v358 = vunpack.c.l.b16 %v74
    %v359 = vunpack.c.l.b16 %v75
    %v360 = vunpack.c.l.b16 %v76
    %v361 = vunpack.c.l.b16 %v77
    %v362 = vunpack.c.l.b16 %v78
    %v363 = vunpack.c.l.b16 %v79
    %v364 = vunpack.c.l.b16 %v80
    %v365 = vunpack.c.l.b16 %v81
    %v366 = vunpack.c.l.b16 %v82
    %v367 = vunpack.c.l.b16 %v83
    %v368 = vunpack.c.l.b16 %v84
    %v369 = vunpack.c.l.b16 %v85
    %v370 = vunpack.c.l.b16 %v86
    %v371 = vunpack.c.l.b16 %v87
    %v372 = vunpack.c.l.b16 %v88
    %v373 = vunpack.c.l.b16 %v89
    %v374 = vunpack.c.l.b16 %v90
    %v375 = vunpack.c.l.b16 %v91
    %v376 = vunpack.c.l.b16 %v92
    %v377 = vunpack.c.l.b16 %v93
    %v378 = vunpack.c.l.b16 %v94
    %v379 = vunpack.c.l.b16 %v95
    %v380 = vunpack.c.l.b16 %v96
    %v381 = vunpack.c.l.b16 %v97
    %v382 = vunpack.c.l.b16 %v98
    %v383 = vunpack.c.l.b16 %v99
    %v384 = vunpack.c.l.b16 %v100
    %v385 = vunpack.c.l.b16 %v101
    %v386 = vunpack.c.l.b16 %v102
    %v387 = vunpack.c.l.b16 %v103
    %v388 = vunpack.c.l.b16 %v104
    %v389 = vunpack.c.l.b16 %v105
    %v390 = vunpack.c.l.b16 %v106
    %v391 = vunpack.c.l.b16 %v107
    %v392 = vunpack.c.l.b16 %v108
    %v393 = vunpack.c.l.b16 %v109
    %v394 = vunpack.c.l.b16 %v110
    %v395 = vunpack.c.l.b16 %v111
    %v396 = vunpack.c.l.b16 %v112
    %v397 = vunpack.c.l.b16 %v113
    %v398 = vunpack.c.l.b16 %v114
    %v399 = vunpack.c.l.b16 %v115
    %v400 = vunpack.c.l.b16 %v116
    %v401 = vunpack.c.l.b16 %v117
    %v402 = vunpack.c.l.b16 %v118
    %v403 = vunpack.c.l.b16 %v119
    %v404 = vunpack.c.l.b16 %v120
    %v405 = vunpack.c.l.b16 %v121
    %v406 = vunpack.c.l.b16 %v122
    %v407 = vunpack.c.l.b16 %v123
    %v408 = vunpack.c.l.b16 %v124
    %v409 = vunpack.c.l.b16 %v125
    %v410 = vunpack.c.l.b16 %v126
    %v411 = vunpack.c.l.b16 %v127
    %v412 = vunpack.c.l.b16 %v128
    %v413 = vunpack.c.l.b16 %v129
    %v414 = vunpack.c.l.b16 %v130
    %v415 = vunpack.c.l.b16 %v131
    %v416 = vunpack.c.l.b16 %v132
    %v417 = vunpack.c.l.b16 %v133
    %v418 = vunpack.c.l.b16 %v134
    %v419 = vunpack.c.l.b16 %v135
    %v420 = vunpack.c.l.b16 %v136
    %v421 = vunpack.c.l.b16 %v137
    %v422 = vunpack.c.l.b16 %v138
    %v423 = vunpack.c.l.b16 %v139
    %v424 = vunpack.c.l.b16 %v140
    %v425 = vunpack.c.l.b16 %v141
    %v426 = vunpack.c.l.b16 %v142
    %v427 = vunpack.c.l.b16 %v143
    %v428 = vunpack.c.l.b16 %v144
    %v429 = vunpack.c.l.b16 %v145
    %v430 = vunpack.c.l.b16 %v146
    %v431 = vunpack.c.l.b16 %v147
    %v432 = vunpack.c.l.b16 %v148
    %v433 = vunpack.c.l.b16 %v149
    %v434 = vunpack.c.l.b16 %v150
    %v435 = vunpack.c.l.b16 %v151
    %v436 = vunpack.c.l.b16 %v152
    %v437 = vunpack.c.l.b16 %v153
    %v438 = vunpack.c.l.b16 %v154
    %v439 = vunpack.c.l.b16 %v155
    %v440 = vunpack.c.l.b16 %v156
    %v441 = vunpack.c.l.b16 %v157
    %v442 = vunpack.c.l.b16 %v158
    %v443 = vunpack.c.l.b16 %v159
    %v444 = vunpack.c.l.b16 %v160
    %v445 = vunpack.c.l.b16 %v161
    %v446 = vunpack.c.l.b16 %v162
    %v447 = vunpack.c.l.b16 %v163
    %v448 = vunpack.c.l.b16 %v164
    %v449 = vunpack.c.l.b16 %v165
    %v450 = vunpack.c.l.b16 %v166
    %v451 = vunpack.c.l.b16 %v167
    %v452 = vunpack.c.l.b16 %v168
    %v453 = vunpack.c.l.b16 %v169
    %v454 = vunpack.c.l.b16 %v170
    %v455 = vunpack.c.l.b16 %v171
    %v456 = vunpack.c.l.b16 %v172
    %v457 = vunpack.c.l.b16 %v173
    %v458 = vunpack.c.l.b16 %v174
    %v459 = vunpack.c.l.b16 %v175
    %v460 = vunpack.c.l.b16 %v176
    %v461 = vunpack.c.l.b16 %v177
    %v462 = vunpack.c.l.b16 %v178
    %v463 = vunpack.c.l.b16 %v179
    %v464 = vunpack.c.l.b16 %v180
    %v465 = vunpack.c.l.b16 %v181
    %v466 = vunpack.c.l.b16 %v182
    %v467 = vunpack.c.l.b16 %v183
    %v468 = vunpack.c.l.b16 %v184
    %v469 = vunpack.c.l.b16 %v185
    %v470 = vunpack.c.l.b16 %v186
    %v471 = vunpack.c.l.b16 %v187
    %v472 = vpack.c.b16 %v345, %v344
    %v473 = vpack.c.b16 %v347, %v346
    %v474 = vpack.c.b16 %v349, %v348
    %v475 = vpack.c.b16 %v351, %v350
    %v476 = vpack.c.b16 %v353, %v352
    %v477 = vpack.c.b16 %v355, %v354
    %v478 = vpack.c.b16 %v357, %v356
    %v479 = vpack.c.b16 %v359, %v358
    %v480 = vpack.c.b16 %v361, %v360
    %v481 = vpack.c.b16 %v363, %v362
    %v482 = vpack.c.b16 %v365, %v364
    %v483 = vpack.c.b16 %v367, %v366
    %v484 = vpack.c.b16 %v369, %v368
    %v485 = vpack.c.b16 %v371, %v370
    %v486 = vpack.c.b16 %v373, %v372
    %v487 = vpack.c.b16 %v375, %v374
    %v488 = vpack.c.b16 %v377, %v376
    %v489 = vpack.c.b16 %v379, %v378
    %v490 = vpack.c.b16 %v381, %v380
    %v491 = vpack.c.b16 %v383, %v382
    %v492 = vpack.c.b16 %v385, %v384
    %v493 = vpack.c.b16 %v387, %v386
    %v494 = vpack.c.b16 %v389, %v388
    %v495 = vpack.c.b16 %v391, %v390
    %v496 = vpack.c.b16 %v393, %v392
    %v497 = vpack.c.b16 %v395, %v394
    %v498 = vpack.c.b16 %v397, %v396
    %v499 = vpack.c.b16 %v399, %v398
    %v500 = vpack.c.b16 %v401, %v400
    %v501 = vpack.c.b16 %v403, %v402
    %v502 = vpack.c.b16 %v405, %v404
    %v503 = vpack.c.b16 %v407, %v406
    %v504 = vpack.c.b16 %v409, %v408
    %v505 = vpack.c.b16 %v411, %v410
    %v506 = vpack.c.b16 %v413, %v412
    %v507 = vpack.c.b16 %v415, %v414
    %v508 = vpack.c.b16 %v417, %v416
    %v509 = vpack.c.b16 %v419, %v418
    %v510 = vpack.c.b16 %v421, %v420
    %v511 = vpack.c.b16 %v423, %v422
    %v512 = vpack.c.b16 %v425, %v424
    %v513 = vpack.c.b16 %v427, %v426
    %v514 = vpack.c.b16 %v429, %v428
    %v515 = vpack.c.b16 %v431, %v430
    %v516 = vpack.c.b16 %v433, %v432
    %v517 = vpack.c.b16 %v435, %v434
    %v518 = vpack.c.b16 %v437, %v436
    %v519 = vpack.c.b16 %v439, %v438
    %v520 = vpack.c.b16 %v441, %v440
    %v521 = vpack.c.b16 %v443, %v442
    %v522 = vpack.c.b16 %v445, %v444
    %v523 = vpack.c.b16 %v447, %v446
    %v524 = vpack.c.b16 %v449, %v448
    %v525 = vpack.c.b16 %v451, %v450
    %v526 = vpack.c.b16 %v453, %v452
    %v527 = vpack.c.b16 %v455, %v454
    %v528 = vpack.c.b16 %v457, %v456
    %v529 = vpack.c.b16 %v459, %v458
    %v530 = vpack.c.b16 %v461, %v460
    %v531 = vpack.c.b16 %v463, %v462
    %v532 = vpack.c.b16 %v465, %v464
    %v533 = vpack.c.b16 %v467, %v466
    %v534 = vpack.c.b16 %v469, %v468
    %v535 = vpack.c.b16 %v471, %v470
    %600 = vmatprep.subr.bf16.mxu0 0
    %601 = vmatpush1.bf16.msra.mxu0 %v479
    %602 = vmatprep.subr.bf16.mxu0 0
    %603 = vmatpush1.bf16.msra.mxu0 %v478
    %604 = vmatprep.subr.bf16.mxu0 0
    %605 = vmatpush1.bf16.msra.mxu0 %v477
    %606 = vmatprep.subr.bf16.mxu0 0
    %607 = vmatpush1.bf16.msra.mxu0 %v476
    %608 = vmatprep.subr.bf16.mxu0 0
    %609 = vmatpush1.bf16.msra.mxu0 %v475
    %610 = vmatprep.subr.bf16.mxu0 0
    %611 = vmatpush1.bf16.msra.mxu0 %v474
    %612 = vmatprep.subr.bf16.mxu0 0
    %613 = vmatpush1.bf16.msra.mxu0 %v473
    %614 = vmatprep.subr.bf16.mxu0 0
    %615 = vmatpush1.bf16.msra.mxu0 %v472
    %616 = vmatprep.subr.bf16.mxu0 0
    %617 = vmatpush2.bf16.msra.mxu0 %v487
    %618 = vmatprep.subr.bf16.mxu0 0
    %619 = vmatpush2.bf16.msra.mxu0 %v486
    %620 = vmatprep.subr.bf16.mxu0 0
    %621 = vmatpush2.bf16.msra.mxu0 %v485
    %622 = vmatprep.subr.bf16.mxu0 0
    %623 = vmatpush2.bf16.msra.mxu0 %v484
    %624 = vmatprep.subr.bf16.mxu0 0
    %625 = vmatpush2.bf16.msra.mxu0 %v483
    %626 = vmatprep.subr.bf16.mxu0 0
    %627 = vmatpush2.bf16.msra.mxu0 %v482
    %628 = vmatprep.subr.bf16.mxu0 0
    %629 = vmatpush2.bf16.msra.mxu0 %v481
    %630 = vmatprep.subr.bf16.mxu0 0
    %631 = vmatpush2.bf16.msra.mxu0 %v480
    %632 = vmatprep.mubr.bf16.mxu0 %v201
    %633 = vmatmul.mubr.bf16.gmra.mxu0 %v200
    %v634 = vpop.f32.mrf.mxu0
    %v635 = vadd.f32 0.0, %v634
    %v636 = vpop.f32.mrf.mxu0
    %v637 = vpop.f32.mrf.mxu0
    %v638 = vpop.f32.mrf.mxu0
    %639 = vdwg.mxu0
    %640 = vmatprep.subr.bf16.mxu0 0
    %641 = vmatpush1.bf16.msra.mxu0 %v495
    %642 = vmatprep.subr.bf16.mxu0 0
    %643 = vmatpush1.bf16.msra.mxu0 %v494
    %644 = vmatprep.subr.bf16.mxu0 0
    %645 = vmatpush1.bf16.msra.mxu0 %v493
    %646 = vmatprep.subr.bf16.mxu0 0
    %647 = vmatpush1.bf16.msra.mxu0 %v492
    %648 = vmatprep.subr.bf16.mxu0 0
    %649 = vmatpush1.bf16.msra.mxu0 %v491
    %650 = vmatprep.subr.bf16.mxu0 0
    %651 = vmatpush1.bf16.msra.mxu0 %v490
    %652 = vmatprep.subr.bf16.mxu0 0
    %653 = vmatpush1.bf16.msra.mxu0 %v489
    %654 = vmatprep.subr.bf16.mxu0 0
    %655 = vmatpush1.bf16.msra.mxu0 %v488
    %656 = vmatprep.subr.bf16.mxu0 0
    %657 = vmatpush2.bf16.msra.mxu0 %v503
    %658 = vmatprep.subr.bf16.mxu0 0
    %659 = vmatpush2.bf16.msra.mxu0 %v502
    %660 = vmatprep.subr.bf16.mxu0 0
    %661 = vmatpush2.bf16.msra.mxu0 %v501
    %662 = vmatprep.subr.bf16.mxu0 0
    %663 = vmatpush2.bf16.msra.mxu0 %v500
    %664 = vmatprep.subr.bf16.mxu0 0
    %665 = vmatpush2.bf16.msra.mxu0 %v499
    %666 = vmatprep.subr.bf16.mxu0 0
    %667 = vmatpush2.bf16.msra.mxu0 %v498
    %668 = vmatprep.subr.bf16.mxu0 0
    %669 = vmatpush2.bf16.msra.mxu0 %v497
    %670 = vmatprep.subr.bf16.mxu0 0
    %671 = vmatpush2.bf16.msra.mxu0 %v496
    %672 = vmatprep.mubr.bf16.mxu0 %v203
    %673 = vmatmul.mubr.bf16.gmra.mxu0 %v202
    %v674 = vpop.f32.mrf.mxu0
    %v675 = vadd.f32 %v635, %v674
    %v676 = vpop.f32.mrf.mxu0
    %v677 = vpop.f32.mrf.mxu0
    %v678 = vpop.f32.mrf.mxu0
    %679 = vdwg.mxu0
    %680 = vmatprep.subr.bf16.mxu0 0
    %681 = vmatpush1.bf16.msra.mxu0 %v511
    %682 = vmatprep.subr.bf16.mxu0 0
    %683 = vmatpush1.bf16.msra.mxu0 %v510
    %684 = vmatprep.subr.bf16.mxu0 0
    %685 = vmatpush1.bf16.msra.mxu0 %v509
    %686 = vmatprep.subr.bf16.mxu0 0
    %687 = vmatpush1.bf16.msra.mxu0 %v508
    %688 = vmatprep.subr.bf16.mxu0 0
    %689 = vmatpush1.bf16.msra.mxu0 %v507
    %690 = vmatprep.subr.bf16.mxu0 0
    %691 = vmatpush1.bf16.msra.mxu0 %v506
    %692 = vmatprep.subr.bf16.mxu0 0
    %693 = vmatpush1.bf16.msra.mxu0 %v505
    %694 = vmatprep.subr.bf16.mxu0 0
    %695 = vmatpush1.bf16.msra.mxu0 %v504
    %696 = vmatprep.subr.bf16.mxu0 0
    %697 = vmatpush2.bf16.msra.mxu0 %v519
    %698 = vmatprep.subr.bf16.mxu0 0
    %699 = vmatpush2.bf16.msra.mxu0 %v518
    %700 = vmatprep.subr.bf16.mxu0 0
    %701 = vmatpush2.bf16.msra.mxu0 %v517
    %702 = vmatprep.subr.bf16.mxu0 0
    %703 = vmatpush2.bf16.msra.mxu0 %v516
    %704 = vmatprep.subr.bf16.mxu0 0
    %705 = vmatpush2.bf16.msra.mxu0 %v515
    %706 = vmatprep.subr.bf16.mxu0 0
    %707 = vmatpush2.bf16.msra.mxu0 %v514
    %708 = vmatprep.subr.bf16.mxu0 0
    %709 = vmatpush2.bf16.msra.mxu0 %v513
    %710 = vmatprep.subr.bf16.mxu0 0
    %711 = vmatpush2.bf16.msra.mxu0 %v512
    %712 = vmatprep.mubr.bf16.mxu0 %v205
    %713 = vmatmul.mubr.bf16.gmra.mxu0 %v204
    %v714 = vpop.f32.mrf.mxu0
    %v715 = vadd.f32 %v675, %v714
    %v716 = vpop.f32.mrf.mxu0
    %v717 = vpop.f32.mrf.mxu0
    %v718 = vpop.f32.mrf.mxu0
    %719 = vdwg.mxu0
    %720 = vmatprep.subr.bf16.mxu0 0
    %721 = vmatpush1.bf16.msra.mxu0 %v527
    %722 = vmatprep.subr.bf16.mxu0 0
    %723 = vmatpush1.bf16.msra.mxu0 %v526
    %724 = vmatprep.subr.bf16.mxu0 0
    %725 = vmatpush1.bf16.msra.mxu0 %v525
    %726 = vmatprep.subr.bf16.mxu0 0
    %727 = vmatpush1.bf16.msra.mxu0 %v524
    %728 = vmatprep.subr.bf16.mxu0 0
    %729 = vmatpush1.bf16.msra.mxu0 %v523
    %730 = vmatprep.subr.bf16.mxu0 0
    %731 = vmatpush1.bf16.msra.mxu0 %v522
    %732 = vmatprep.subr.bf16.mxu0 0
    %733 = vmatpush1.bf16.msra.mxu0 %v521
    %734 = vmatprep.subr.bf16.mxu0 0
    %735 = vmatpush1.bf16.msra.mxu0 %v520
    %736 = vmatprep.subr.bf16.mxu0 0
    %737 = vmatpush2.bf16.msra.mxu0 %v535
    %738 = vmatprep.subr.bf16.mxu0 0
    %739 = vmatpush2.bf16.msra.mxu0 %v534
    %740 = vmatprep.subr.bf16.mxu0 0
    %741 = vmatpush2.bf16.msra.mxu0 %v533
    %742 = vmatprep.subr.bf16.mxu0 0
    %743 = vmatpush2.bf16.msra.mxu0 %v532
    %744 = vmatprep.subr.bf16.mxu0 0
    %745 = vmatpush2.bf16.msra.mxu0 %v531
    %746 = vmatprep.subr.bf16.mxu0 0
    %747 = vmatpush2.bf16.msra.mxu0 %v530
    %748 = vmatprep.subr.bf16.mxu0 0
    %749 = vmatpush2.bf16.msra.mxu0 %v529
    %750 = vmatprep.subr.bf16.mxu0 0
    %751 = vmatpush2.bf16.msra.mxu0 %v528
    %752 = vmatprep.mubr.bf16.mxu0 %v207
    %753 = vmatmul.mubr.bf16.gmra.mxu0 %v206
    %v754 = vpop.f32.mrf.mxu0
    %v755 = vadd.f32 %v715, %v754
    %v756 = vpop.f32.mrf.mxu0
    %v757 = vpop.f32.mrf.mxu0
    %v758 = vpop.f32.mrf.mxu0
    %759 = vdwg.mxu0
    %v760 = vld [vmem:[#allocation7] sm:$0xff]
    %v761 = vadd.f32 %v760, %v755
    %v762 = vld [vmem:[%s2] sm:$0x1]
    %v764 = vlaneseq
    %v765 = vshrl.u32 %v764, 7
    %v766 = vsub.s32 0, %v765
    %v767 = vrot.slane %v762, %v766
    %v769 = vadd.f32 %v761, %v767
    %v770 = vmul.f32 %v769, 0.5
    %771 = vst [vmem:[#allocation8] sm:$0xff] %v770
    // Predicated region
    $region30: #{tpu_custom_call.1} parent=1 // pred_check
      _
    $region31: #{tpu_custom_call.1} parent=1 // pred_check_branch
      %773 = sbr.rel (0) target = $region33
    $region32: #{tpu_custom_call.1} parent=1 // pred_region
      %s775 = ssub.s32 128, 128
      %776 = vsyncadd [#allocation4], %s775
      %s778 = sshll.u32 [#allocation8], 4
      %s779 = int_to_ptr.vmem [resolvable:$true] %s778
      %781 = dma.vmem_to_hbm [thread:$0]  %s779, 128, %s4, [#allocation4]
    $region33: #{tpu_custom_call.1} parent=1 // pred_fallthru
      _
    // Predicated region
    $region34: #{tpu_custom_call.1} parent=1 // pred_check
      _
    $region35: #{tpu_custom_call.1} parent=1 // pred_check_branch
      %783 = sbr.rel (0) target = $region37
    $region36: #{tpu_custom_call.1} parent=1 // pred_region
      %784 = dma.done [#allocation4], 128
    $region37: #{tpu_custom_call.1} parent=1 // pred_fallthru
      _
    %785 = vsyncpa [#allocation3], 1
    %786 = vsyncpa [#allocation6], 1
    %787 = vsyncpa [#allocation4], 1

</llo_original>
